<compile_context>
chip_gen: v5e
topology: v5e:2x2
jax: 0.10.0
libtpu: 0.0.40
codegen_flags: <defaults>
</compile_context>

<pallas_src>
import jax
import jax.numpy as jnp
import numpy as np
from jax.experimental import pallas as pl
from jax.experimental.pallas import tpu as pltpu

MULT = 0.0025
EPS = 1e-6   # F.pairwise_distance default eps (added to the element-wise difference)


def point_loss_kernel(yhat_ref, y_ref, bs_ref, out_ref):
    # yhat_ref, y_ref : (B, Kp)    VMEM   zero-padded blendshape coefficients
    # bs_ref          : (Kp, 3*P)  VMEM   coord-major flatten of (K, 3, P); padded rows are 0
    # out_ref         : (1, 1)     SMEM   scalar loss
    delta = yhat_ref[...] - y_ref[...]                              # (B, Kp)

    # (y_hat - y) @ bs == y_hat_face - y_face   (the 'face' term cancels exactly;
    # zero-padded coefficient columns / bs rows contribute nothing).
    diff = jnp.dot(delta, bs_ref[...],
                   preferred_element_type=jnp.float32) + EPS        # (B, 3*P)
    sq = diff * diff

    P = sq.shape[1] // 3
    # pairwise_distance over the last dim of the transposed (B, 3, P) faces:
    #   dist[b, c] = sqrt(sum_p diff[b, c, p]^2)
    # P == 128, so each coordinate slice is lane-tile aligned; keep everything 2D.
    dist_b1 = (jnp.sqrt(jnp.sum(sq[:, 0 * P:1 * P], axis=-1, keepdims=True))
               + jnp.sqrt(jnp.sum(sq[:, 1 * P:2 * P], axis=-1, keepdims=True))
               + jnp.sqrt(jnp.sum(sq[:, 2 * P:3 * P], axis=-1, keepdims=True)))  # (B, 1)

    out_ref[0, 0] = jnp.sum(dist_b1) * MULT


@jax.jit
def _point_loss_call(y_hat, y, bs_flat):
    """y_hat, y: (B, K) f32; bs_flat: (Kp, 3*P) f32 (precomputed, K zero-padded)."""
    kp = bs_flat.shape[0]
    pad = kp - y_hat.shape[1]
    y_hat_p = jnp.pad(y_hat.astype(jnp.float32), ((0, 0), (0, pad)))
    y_p = jnp.pad(y.astype(jnp.float32), ((0, 0), (0, pad)))

    out = pl.pallas_call(
        point_loss_kernel,
        out_shape=jax.ShapeDtypeStruct((1, 1), jnp.float32),
        in_specs=[
            pl.BlockSpec(memory_space=pltpu.MemorySpace.VMEM),  # y_hat (padded)
            pl.BlockSpec(memory_space=pltpu.MemorySpace.VMEM),  # y     (padded)
            pl.BlockSpec(memory_space=pltpu.MemorySpace.VMEM),  # bs    (coord-major, padded)
        ],
        out_specs=pl.BlockSpec(memory_space=pltpu.MemorySpace.SMEM),
    )(y_hat_p, y_p, bs_flat)
    return out[0, 0]


def _round_up(x, m):
    return ((x + m - 1) // m) * m


class PointLoss:
    """JAX/Pallas analogue of util.losses.PointLoss.

    The face / blendshape point buffers are passed in instead of being loaded
    from a JSON checkpoint.
    # TODO(synk): real module loads face/blendshapes from './data/bs_points_a.json'.
    """

    def __init__(self, face_p3, bs_kp3):
        K, P, _ = bs_kp3.shape
        self.K, self.P = K, P
        self.mult = MULT
        # `face` cancels out of the loss (y_hat_face - y_face is face-free); kept
        # only to mirror the original buffer registration.
        self.face = jnp.asarray(face_p3, dtype=jnp.float32)

        # Precompute ONCE (init-time, not per call): coord-major (K, 3*P) layout so
        # the point axis (P=128) is lane-dense, then zero-pad K -> Kp (multiple of
        # 64) so the MXU contraction dim is sublane-aligned with no compiler masks.
        Kp = _round_up(K, 64)
        self.Kp = Kp
        bs_flat = jnp.transpose(jnp.asarray(bs_kp3, jnp.float32), (0, 2, 1)).reshape(K, 3 * P)
        self.bs_flat = jax.device_put(jnp.pad(bs_flat, ((0, Kp - K), (0, 0))))

    def __call__(self, y_hat, y):
        return _point_loss_call(y_hat, y, self.bs_flat)


def point_loss_ref(y_hat, y, face_p3, bs_kp3):
    """Plain-JAX reference mirroring the PyTorch forward exactly (including face)."""
    yhat_face = face_p3[None] + jnp.einsum('bk,kpc->bpc', y_hat, bs_kp3)   # (B,P,3)
    y_face = face_p3[None] + jnp.einsum('bk,kpc->bpc', y, bs_kp3)
    x1 = jnp.transpose(yhat_face, (0, 2, 1))                               # (B,3,P)
    x2 = jnp.transpose(y_face, (0, 2, 1))
    dist = jnp.sqrt(jnp.sum((x1 - x2 + EPS) ** 2, axis=-1))                # (B,3)
    return jnp.sum(dist) * MULT


if __name__ == "__main__":
    # Deterministic synthetic "blendshape" buffers (the .json load in __init__ is
    # replaced by in-script initialization).
    B, K, P = 2, 51, 128
    key = jax.random.PRNGKey(0)
    k_face, k_bs, k_yh, k_y = jax.random.split(key, 4)

    face = jax.random.normal(k_face, (P, 3), dtype=jnp.float32)              # 'face' buffer
    bs_tensor = 0.1 * jax.random.normal(k_bs, (K, P, 3), dtype=jnp.float32)  # 'bs_tensor' buffer
    y_hat = jax.random.uniform(k_yh, (B, K), dtype=jnp.float32)
    y = jax.random.uniform(k_y, (B, K), dtype=jnp.float32)

    loss_mod = PointLoss(face, bs_tensor)
    loss = jax.block_until_ready(loss_mod(y_hat, y))
    ref = jax.block_until_ready(point_loss_ref(y_hat, y, face, bs_tensor))

    np.testing.assert_allclose(np.asarray(loss), np.asarray(ref), rtol=1e-4, atol=1e-5)
    print("KERNEL_OK")
</pallas_src>

<mosaic_0001>
module attributes {stable_mosaic.version = 11 : i64} {
  func.func @point_loss_kernel(%arg0: memref<2x64xf32, #tpu.memory_space<vmem>>, %arg1: memref<2x64xf32, #tpu.memory_space<vmem>>, %arg2: memref<64x384xf32, #tpu.memory_space<vmem>>, %arg3: memref<1x1xf32, #tpu.memory_space<smem>>) attributes {dimension_semantics = [], scalar_prefetch = 0 : i64, scratch_operands = 0 : i64, tpu.core_type = #tpu.core_type<tc>} {
    %c0 = arith.constant 0 : index
    %c0_0 = arith.constant 0 : index
    %0 = vector.load %arg0[%c0, %c0_0] : memref<2x64xf32, #tpu.memory_space<vmem>>, vector<2x64xf32>
    %c0_1 = arith.constant 0 : index
    %c0_2 = arith.constant 0 : index
    %1 = vector.load %arg1[%c0_1, %c0_2] : memref<2x64xf32, #tpu.memory_space<vmem>>, vector<2x64xf32>
    %2 = arith.subf %0, %1 : vector<2x64xf32>
    %c0_3 = arith.constant 0 : index
    %c0_4 = arith.constant 0 : index
    %3 = vector.load %arg2[%c0_3, %c0_4] : memref<64x384xf32, #tpu.memory_space<vmem>>, vector<64x384xf32>
    %cst = arith.constant dense<0.000000e+00> : vector<2x384xf32>
    %4 = tpu.matmul %2, %3, %cst {dimension_numbers = #tpu.dot_dimension_numbers<[1], [0], [0], [1], [0, 0, 1, 1], [], []>} : vector<2x64xf32>, vector<64x384xf32>, vector<2x384xf32> -> vector<2x384xf32>
    %cst_5 = arith.constant 9.99999997E-7 : f32
    %5 = vector.broadcast %cst_5 : f32 to vector<2x384xf32>
    %6 = arith.addf %4, %5 : vector<2x384xf32>
    %7 = arith.mulf %6, %6 : vector<2x384xf32>
    %8 = vector.extract_strided_slice %7 {offsets = [0, 0], sizes = [2, 128], strides = [1, 1]} : vector<2x384xf32> to vector<2x128xf32>
    %cst_6 = arith.constant dense<0.000000e+00> : vector<2xf32>
    %9 = vector.multi_reduction <add>, %8, %cst_6 [1] : vector<2x128xf32> to vector<2xf32>
    %10 = vector.shape_cast %9 : vector<2xf32> to vector<2x1xf32>
    %11 = math.sqrt %10 : vector<2x1xf32>
    %12 = vector.extract_strided_slice %7 {offsets = [0, 128], sizes = [2, 128], strides = [1, 1]} : vector<2x384xf32> to vector<2x128xf32>
    %cst_7 = arith.constant dense<0.000000e+00> : vector<2xf32>
    %13 = vector.multi_reduction <add>, %12, %cst_7 [1] : vector<2x128xf32> to vector<2xf32>
    %14 = vector.shape_cast %13 : vector<2xf32> to vector<2x1xf32>
    %15 = math.sqrt %14 : vector<2x1xf32>
    %16 = arith.addf %11, %15 : vector<2x1xf32>
    %17 = vector.extract_strided_slice %7 {offsets = [0, 256], sizes = [2, 128], strides = [1, 1]} : vector<2x384xf32> to vector<2x128xf32>
    %cst_8 = arith.constant dense<0.000000e+00> : vector<2xf32>
    %18 = vector.multi_reduction <add>, %17, %cst_8 [1] : vector<2x128xf32> to vector<2xf32>
    %19 = vector.shape_cast %18 : vector<2xf32> to vector<2x1xf32>
    %20 = math.sqrt %19 : vector<2x1xf32>
    %21 = arith.addf %16, %20 : vector<2x1xf32>
    %22 = vector.shape_cast %21 : vector<2x1xf32> to vector<1x2x1xf32>
    %cst_9 = arith.constant dense<0.000000e+00> : vector<1xf32>
    %23 = vector.multi_reduction <add>, %22, %cst_9 [1, 2] : vector<1x2x1xf32> to vector<1xf32>
    %24 = vector.shape_cast %23 : vector<1xf32> to vector<1x1x1xf32>
    %25 = vector.extract %24[0, 0, 0] : f32 from vector<1x1x1xf32>
    %cst_10 = arith.constant 2.500000e-03 : f32
    %26 = arith.mulf %25, %cst_10 : f32
    %c0_11 = arith.constant 0 : index
    %c0_12 = arith.constant 0 : index
    %27 = memref.load %arg3[%c0_11, %c0_12] : memref<1x1xf32, #tpu.memory_space<smem>>
    memref.store %26, %arg3[%c0_11, %c0_12] : memref<1x1xf32, #tpu.memory_space<smem>>
    return
  }
}

</mosaic_0001>

<llo_original>
// kernel: _point_loss_call.1
$region0: #{_point_loss_call.1}
  #allocation0 [shape = 'u32[]', space=smem, size = 0x4, offset = 0x4, fixed_abs, tag = 'smem constant byte address 0x4 - core index']
  #allocation1 [shape = 'u32[72,128]{1,0:T(1,128)}', space=vmem, size = 0x9000, scoped, tag = 'internal scratch']
  %s0 = inlined_call_operand.vmem [shape: f32[2,64], index: 0, kind: input, shape index: {}]
  %s1 = inlined_call_operand.vmem [shape: f32[2,64], index: 1, kind: input, shape index: {}]
  %s2 = inlined_call_operand.hbm [shape: f32[64,384], index: 2, kind: input, shape index: {}]
  %s3 = inlined_call_operand.hbm [shape: f32[1,1], index: 3, kind: output, shape index: {}]
  %s4 = sld [smem:[#allocation0]]
  $region26: #{_point_loss_call.1} parent=0
    _
  %s6 = ssub.s32 1, %s4
  %s7 = scalar_select 0, %s6, %s4
  $region1: #{_point_loss_call.1} parent=0
    #allocation2 [shape = 'u8[98304]{0}', space=vmem, size = 0x18000, scoped, tag = 'input window, operand 2, single buffered']
    #allocation3 [shape = 's32[1]{0}', space=sflag, size = 0x4, scoped, tag = 'scoped memory for _point_loss_call.1']
    #allocation4 [shape = 's32[1]{0}', space=sflag, size = 0x4, scoped, tag = 'scoped memory for _point_loss_call.1']
    #allocation5 [shape = 'u8[512]{0}', space=smem, size = 0x200, scoped, tag = 'output window, operand 0, single buffered']
    %8 = vsyncpa [#allocation3], 0
    %9 = vsyncpa [#allocation4], 0
    // Predicated region
    $region2: #{_point_loss_call.1} parent=1 // pred_check
      _
    $region3: #{_point_loss_call.1} parent=1 // pred_check_branch
      %11 = sbr.rel (0) target = $region5
    $region4: #{_point_loss_call.1} parent=1 // pred_region
      _
    $region5: #{_point_loss_call.1} parent=1 // pred_fallthru
      _
    // Predicated region
    $region6: #{_point_loss_call.1} parent=1 // pred_check
      _
    $region7: #{_point_loss_call.1} parent=1 // pred_check_branch
      %13 = sbr.rel (0) target = $region9
    $region8: #{_point_loss_call.1} parent=1 // pred_region
      _
    $region9: #{_point_loss_call.1} parent=1 // pred_fallthru
      _
    // Predicated region
    $region10: #{_point_loss_call.1} parent=1 // pred_check
      _
    $region11: #{_point_loss_call.1} parent=1 // pred_check_branch
      %15 = sbr.rel (0) target = $region13
    $region12: #{_point_loss_call.1} parent=1 // pred_region
      %17 = vsyncadd [#allocation3], 0
      %s18 = sshll.u32 %s2, 4
      %s19 = int_to_ptr.hbm [resolvable:$true] %s18
      %s20 = sshll.u32 [#allocation2], 4
      %s21 = int_to_ptr.vmem [resolvable:$true] %s20
      %26 = dma.hbm_to_vmem [thread:$0]  %s19, 3072, %s21, [#allocation3], 384, 384, 24
    $region13: #{_point_loss_call.1} parent=1 // pred_fallthru
      _
    // Predicated region
    $region14: #{_point_loss_call.1} parent=1 // pred_check
      _
    $region15: #{_point_loss_call.1} parent=1 // pred_check_branch
      %28 = sbr.rel (0) target = $region17
    $region16: #{_point_loss_call.1} parent=1 // pred_region
      %30 = dma.done [#allocation3], 3072
    $region17: #{_point_loss_call.1} parent=1 // pred_fallthru
      _
    %v31 = vld [vmem:[%s0] sm:$0x3]
    %v32 = vld [vmem:[%s1] sm:$0x3]
    %v33 = vsub.f32 %v31, %v32
    %v34 = vld [vmem:[#allocation2] sm:$0xff]
    %v35 = vld [vmem:[#allocation2 + $0x8] sm:$0xff]
    %v36 = vld [vmem:[#allocation2 + $0x10] sm:$0xff]
    %v37 = vld [vmem:[#allocation2 + $0x18] sm:$0xff]
    %v38 = vld [vmem:[#allocation2 + $0x20] sm:$0xff]
    %v39 = vld [vmem:[#allocation2 + $0x28] sm:$0xff]
    %v40 = vld [vmem:[#allocation2 + $0x30] sm:$0xff]
    %v41 = vld [vmem:[#allocation2 + $0x38] sm:$0xff]
    %v42 = vld [vmem:[#allocation2 + $0x40] sm:$0xff]
    %v43 = vld [vmem:[#allocation2 + $0x48] sm:$0xff]
    %v44 = vld [vmem:[#allocation2 + $0x50] sm:$0xff]
    %v45 = vld [vmem:[#allocation2 + $0x58] sm:$0xff]
    %v46 = vld [vmem:[#allocation2 + $0x60] sm:$0xff]
    %v47 = vld [vmem:[#allocation2 + $0x68] sm:$0xff]
    %v48 = vld [vmem:[#allocation2 + $0x70] sm:$0xff]
    %v49 = vld [vmem:[#allocation2 + $0x78] sm:$0xff]
    %v50 = vld [vmem:[#allocation2 + $0x80] sm:$0xff]
    %v51 = vld [vmem:[#allocation2 + $0x88] sm:$0xff]
    %v52 = vld [vmem:[#allocation2 + $0x90] sm:$0xff]
    %v53 = vld [vmem:[#allocation2 + $0x98] sm:$0xff]
    %v54 = vld [vmem:[#allocation2 + $0xa0] sm:$0xff]
    %v55 = vld [vmem:[#allocation2 + $0xa8] sm:$0xff]
    %v56 = vld [vmem:[#allocation2 + $0xb0] sm:$0xff]
    %v57 = vld [vmem:[#allocation2 + $0xb8] sm:$0xff]
    %vm58 = vcmask 523264
    %v60 = vsel %vm58, %v33, 0
    %62 = vmatpush.msra.mxu0 0.0
    %63 = vmatpush.msra.mxu0 0.0
    %64 = vmatpush.msra.mxu0 0.0
    %65 = vmatpush.msra.mxu0 0.0
    %66 = vmatpush.msra.mxu0 0.0
    %67 = vmatpush.msra.mxu0 0.0
    %68 = vmatpush.msra.mxu0 0.0
    %69 = vmatpush.msra.mxu0 0.0
    %70 = vmatpush.msra.mxu0 %v55
    %71 = vmatpush.msra.mxu0 %v52
    %72 = vmatpush.msra.mxu0 %v49
    %73 = vmatpush.msra.mxu0 %v46
    %74 = vmatpush.msra.mxu0 %v43
    %75 = vmatpush.msra.mxu0 %v40
    %76 = vmatpush.msra.mxu0 %v37
    %77 = vmatpush.msra.mxu0 %v34
    %78 = vmatmul.f32.gmra.mxu0 %v60
    %v79 = vpop.f32.mrf.mxu0
    %v80 = vadd.f32 1e-06, %v79
    %81 = vdwg.mxu0
    %82 = vmatpush.msra.mxu0 0.0
    %83 = vmatpush.msra.mxu0 0.0
    %84 = vmatpush.msra.mxu0 0.0
    %85 = vmatpush.msra.mxu0 0.0
    %86 = vmatpush.msra.mxu0 0.0
    %87 = vmatpush.msra.mxu0 0.0
    %88 = vmatpush.msra.mxu0 0.0
    %89 = vmatpush.msra.mxu0 0.0
    %90 = vmatpush.msra.mxu0 %v56
    %91 = vmatpush.msra.mxu0 %v53
    %92 = vmatpush.msra.mxu0 %v50
    %93 = vmatpush.msra.mxu0 %v47
    %94 = vmatpush.msra.mxu0 %v44
    %95 = vmatpush.msra.mxu0 %v41
    %96 = vmatpush.msra.mxu0 %v38
    %97 = vmatpush.msra.mxu0 %v35
    %98 = vmatmul.f32.gmra.mxu0 %v60
    %v99 = vpop.f32.mrf.mxu0
    %v100 = vadd.f32 1e-06, %v99
    %101 = vdwg.mxu0
    %102 = vmatpush.msra.mxu0 0.0
    %103 = vmatpush.msra.mxu0 0.0
    %104 = vmatpush.msra.mxu0 0.0
    %105 = vmatpush.msra.mxu0 0.0
    %106 = vmatpush.msra.mxu0 0.0
    %107 = vmatpush.msra.mxu0 0.0
    %108 = vmatpush.msra.mxu0 0.0
    %109 = vmatpush.msra.mxu0 0.0
    %110 = vmatpush.msra.mxu0 %v57
    %111 = vmatpush.msra.mxu0 %v54
    %112 = vmatpush.msra.mxu0 %v51
    %113 = vmatpush.msra.mxu0 %v48
    %114 = vmatpush.msra.mxu0 %v45
    %115 = vmatpush.msra.mxu0 %v42
    %116 = vmatpush.msra.mxu0 %v39
    %117 = vmatpush.msra.mxu0 %v36
    %118 = vmatmul.f32.gmra.mxu0 %v60
    %v119 = vpop.f32.mrf.mxu0
    %v120 = vadd.f32 1e-06, %v119
    %121 = vdwg.mxu0
    %v122 = vmul.f32 %v80, %v80
    %v123 = vmul.f32 %v100, %v100
    %v124 = vmul.f32 %v120, %v120
    %vm125 = vcmask 1041408
    %v126 = vsel %vm125, %v122, 0.0
    %127 = vadd.xlane.f32.xlu0 %v126
    %v128 = vpop.xlane.xlu0 %127
    %v129 = vrsqrt.pop %v128
    %v130 = vmul.f32 %v129, %v128
    %v131 = vmul.f32 %v130, %v129
    %v132 = vmul.f32 0.5, %v131
    %v133 = vsub.f32 1.5, %v132
    %v134 = vmul.f32 %v129, %v133
    %v135 = vmul.f32 %v128, %v134
    %vm136 = vcmp.eq.f32.partialorder %v128, inf
    %v137 = vsel %vm136, %v128, %v135
    %vm138 = vcmp.eq.f32.partialorder %v128, 0.0
    %v139 = vand.u32 %v128, 2147483648
    %v140 = vsel %vm138, %v139, %v137
    %v141 = vsel %vm125, %v123, 0.0
    %142 = vadd.xlane.f32.xlu0 %v141
    %v143 = vpop.xlane.xlu0 %142
    %v144 = vrsqrt.pop %v143
    %v145 = vmul.f32 %v144, %v143
    %v146 = vmul.f32 %v145, %v144
    %v147 = vmul.f32 0.5, %v146
    %v148 = vsub.f32 1.5, %v147
    %v149 = vmul.f32 %v144, %v148
    %v150 = vmul.f32 %v143, %v149
    %vm151 = vcmp.eq.f32.partialorder %v143, inf
    %v152 = vsel %vm151, %v143, %v150
    %vm153 = vcmp.eq.f32.partialorder %v143, 0.0
    %v154 = vand.u32 %v143, 2147483648
    %v155 = vsel %vm153, %v154, %v152
    %v156 = vadd.f32 %v140, %v155
    %v157 = vsel %vm125, %v124, 0.0
    %158 = vadd.xlane.f32.xlu0 %v157
    %v159 = vpop.xlane.xlu0 %158
    %v160 = vrsqrt.pop %v159
    %v161 = vmul.f32 %v160, %v159
    %v162 = vmul.f32 %v161, %v160
    %v163 = vmul.f32 0.5, %v162
    %v164 = vsub.f32 1.5, %v163
    %v165 = vmul.f32 %v160, %v164
    %v166 = vmul.f32 %v159, %v165
    %vm167 = vcmp.eq.f32.partialorder %v159, inf
    %v168 = vsel %vm167, %v159, %v166
    %vm169 = vcmp.eq.f32.partialorder %v159, 0.0
    %v170 = vand.u32 %v159, 2147483648
    %v171 = vsel %vm169, %v170, %v168
    %v172 = vadd.f32 %v156, %v171
    %vm173 = vcmask 1024
    %v174 = vsel %vm173, %v172, 0.0
    %175 = vadd.xlane.f32.xlu0 %v174
    %v176 = vpop.xlane.xlu0 %175
    %v177 = vrot.slane %v176, 4
    %v178 = vadd.f32 %v176, %v177
    %v179 = vrot.slane %v178, 2
    %v180 = vadd.f32 %v178, %v179
    %v181 = vrot.slane %v180, 1
    %v182 = vadd.f32 %v180, %v181
    %s183 = vtos %v182
    %s184 = smul.f32 %s183, 0.0025
    %s185 = scalar_lea.smem [#allocation5], 0
    %186 = sst [smem:[%s185]] %s184
    // Predicated region
    $region18: #{_point_loss_call.1} parent=1 // pred_check
      _
    $region19: #{_point_loss_call.1} parent=1 // pred_check_branch
      %188 = sbr.rel (0) target = $region21
    $region20: #{_point_loss_call.1} parent=1 // pred_region
      %190 = vsyncadd [#allocation4], 0
      %s192 = sshll.u32 %s3, 4
      %s193 = int_to_ptr.hbm [resolvable:$true] %s192
      %195 = dma.smem_to_hbm [#allocation5], 16, %s193, [#allocation4]
    $region21: #{_point_loss_call.1} parent=1 // pred_fallthru
      _
    // Predicated region
    $region22: #{_point_loss_call.1} parent=1 // pred_check
      _
    $region23: #{_point_loss_call.1} parent=1 // pred_check_branch
      %197 = sbr.rel (0) target = $region25
    $region24: #{_point_loss_call.1} parent=1 // pred_region
      %199 = dma.done [#allocation4], 16
    $region25: #{_point_loss_call.1} parent=1 // pred_fallthru
      _
    %200 = sfence
    %201 = vsyncpa [#allocation3], 1
    %202 = vsyncpa [#allocation4], 1

</llo_original>
